<compile_context>
chip_gen: v7x
topology: tpu7x:2x2x1
jax: 0.10.0
libtpu: 0.0.40
codegen_flags: <defaults>
</compile_context>

<pallas_src>
import jax
import jax.numpy as jnp
from jax.experimental import pallas as pl
from jax.experimental.pallas import tpu as pltpu


_LANES = 512  # lane width of each tile (multiple of 128 -> unmasked vst stores)


def _round_up(a, b):
    return ((a + b - 1) // b) * b


def _sublane_quantum(dtype):
    # Sublane packing quantum: 8 rows for 32-bit dtypes, 16 for bf16, 32 for int8.
    return 8 * max(1, 4 // jnp.dtype(dtype).itemsize)


def _target_block_bytes():
    # Per-generation block sizing:
    #   v6e / v7x: ~4 MiB blocks (in+out double buffering = 16 MiB, fits the
    #              32 MiB scoped VMEM default, well under v7x's 64 MiB physical).
    #   v5e:       ~2 MiB blocks (8 MiB footprint, fits the 16 MiB scoped default).
    try:
        kind = jax.devices()[0].device_kind.lower()
    except Exception:
        kind = ""
    if ("v6" in kind) or ("v7" in kind) or ("7x" in kind):
        return 4 * 1024 * 1024
    return 2 * 1024 * 1024


def _denoiser_kernel(sigma_ref, x_ref, o_ref):
    # sigma_ref: (1,) f32 scalar in SMEM (noise level; unused by the base class).
    # x_ref / o_ref: (tile_rows, _LANES) VMEM tiles.
    # TODO(synk): Denoiser.forward is abstract in PyTorch (returns
    # NotImplementedError); a concrete subclass would use sigma_ref[0] in its
    # compute here. The identity map is the only faithful runnable realization.
    del sigma_ref
    o_ref[...] = x_ref[...]


def _run_copy(x2d, sigma_arr, tile_rows, alias_input):
    rows, lanes = x2d.shape
    grid = (pl.cdiv(rows, tile_rows),)
    return pl.pallas_call(
        _denoiser_kernel,
        out_shape=jax.ShapeDtypeStruct(x2d.shape, x2d.dtype),
        grid=grid,
        in_specs=[
            pl.BlockSpec(memory_space=pltpu.MemorySpace.SMEM),     # sigma scalar
            pl.BlockSpec((tile_rows, lanes), lambda i: (i, 0)),    # input tile
        ],
        out_specs=pl.BlockSpec((tile_rows, lanes), lambda i: (i, 0)),
        # Alias only when the input slab is a dead temp (pad path); otherwise
        # XLA would insert a defensive full copy of the caller's live buffer.
        input_output_aliases=({1: 0} if alias_input else {}),
        compiler_params=pltpu.CompilerParams(
            dimension_semantics=("parallel",),   # shard grid across v7x's 2 TCs
        ),
    )(sigma_arr, x2d)


def _split_for_two_blocks(rows, tile_rows, sublane):
    """Pick an effective tile height; guarantee >=2 grid blocks when possible."""
    tile_rows_eff = min(tile_rows, rows)
    if rows > sublane and pl.cdiv(rows, tile_rows_eff) < 2:
        tile_rows_eff = _round_up(pl.cdiv(rows, 2), sublane)
    return tile_rows_eff


@jax.jit
def denoiser_forward(x, sigma):
    """Apply the (base-class) denoiser D(x, sigma) with a Pallas TPU kernel.

    :param x: noisy input, e.g. shape (N, C, H, W), any TPU float dtype.
    :param sigma: noise level, python float or scalar array (unused by the
        abstract base class; plumbed to SMEM for concrete subclasses).
    :returns: tensor with the same shape/dtype as x.
    """
    orig_shape = x.shape
    total = int(x.size)
    sublane = _sublane_quantum(x.dtype)
    min_block_elems = sublane * _LANES

    # Degenerate fast path: empty / tiny tensors (smaller than one minimal
    # (sublane, 512) block). The fastest identity is no kernel at all.
    if total < min_block_elems:
        return x

    sigma_arr = jnp.asarray(sigma, dtype=jnp.float32).reshape((1,))

    itemsize = jnp.dtype(x.dtype).itemsize
    # dtype-scaled tile so block *bytes* stay constant (~2-4 MiB) across dtypes.
    tile_rows = max(sublane, _target_block_bytes() // (_LANES * itemsize))
    tile_rows = _round_up(tile_rows, sublane)

    if total % min_block_elems == 0:
        # No-pad / no-slice fast path: reshape directly into the lane-dense slab.
        rows = total // _LANES
        tile_rows_eff = _split_for_two_blocks(rows, tile_rows, sublane)
        x2d = x.reshape(rows, _LANES)
        out2d = _run_copy(x2d, sigma_arr, tile_rows_eff, alias_input=False)
        return out2d.reshape(orig_shape)

    # Ragged path: pad only to the sublane-aligned row count; the trailing grid
    # block may be partial (Pallas masks it). The padded slab is a dead temp,
    # so aliasing the output onto it is free.
    rows = _round_up(pl.cdiv(total, _LANES), sublane)
    padded_total = rows * _LANES
    flat = jnp.pad(x.reshape(-1), (0, padded_total - total))
    x2d = flat.reshape(rows, _LANES)
    tile_rows_eff = _split_for_two_blocks(rows, tile_rows, sublane)
    out2d = _run_copy(x2d, sigma_arr, tile_rows_eff, alias_input=True)
    return out2d.reshape(-1)[:total].reshape(orig_shape)


if __name__ == "__main__":
    key = jax.random.PRNGKey(0)
    k0, k1, k2 = jax.random.split(key, 3)

    # 1) Small NCHW batch whose size divides the minimal block exactly
    #    -> no-pad, no-slice kernel fast path (grid split into >= 2 blocks).
    x = jax.random.normal(k0, (2, 4, 32, 32), dtype=jnp.float32)
    sigma = 0.1
    y = denoiser_forward(x, sigma)
    jax.block_until_ready(y)
    assert y.shape == x.shape and y.dtype == x.dtype
    assert bool(jnp.allclose(y, x))

    # 2) Ragged-size input -> minimal sublane-aligned pad + partial trailing
    #    grid block, with input->output aliasing on the dead padded temp.
    x2 = jax.random.normal(k1, (3, 5, 33, 37), dtype=jnp.float32)
    y2 = denoiser_forward(x2, 0.25)
    jax.block_until_ready(y2)
    assert y2.shape == x2.shape and y2.dtype == x2.dtype
    assert bool(jnp.allclose(y2, x2))

    # 3) Tiny input -> degenerate no-kernel fast path.
    x3 = jax.random.normal(k2, (2, 4, 16, 16), dtype=jnp.float32)
    y3 = denoiser_forward(x3, 0.05)
    jax.block_until_ready(y3)
    assert y3.shape == x3.shape and bool(jnp.allclose(y3, x3))

    print("KERNEL_OK")
</pallas_src>

<mosaic_0001>
module attributes {stable_mosaic.version = 11 : i64} {
  func.func @_denoiser_kernel(%arg0: i32, %arg1: memref<1xf32, #tpu.memory_space<smem>>, %arg2: memref<8x512xf32, #tpu.memory_space<vmem>>, %arg3: memref<8x512xf32, #tpu.memory_space<vmem>>) attributes {dimension_semantics = [#tpu.dimension_semantics<parallel>], iteration_bounds = array<i64: 2>, scalar_prefetch = 0 : i64, scratch_operands = 0 : i64, tpu.core_type = #tpu.core_type<tc>, window_params = [{transform_indices = @transform_0, window_bounds = array<i64: 1>}, {transform_indices = @transform_1, window_bounds = array<i64: 8, 512>}, {transform_indices = @transform_2, window_bounds = array<i64: 8, 512>}]} {
    %c0 = arith.constant 0 : index
    %c0_0 = arith.constant 0 : index
    %0 = vector.load %arg2[%c0, %c0_0] : memref<8x512xf32, #tpu.memory_space<vmem>>, vector<8x512xf32>
    %c0_1 = arith.constant 0 : index
    %c0_2 = arith.constant 0 : index
    %1 = vector.load %arg3[%c0_1, %c0_2] : memref<8x512xf32, #tpu.memory_space<vmem>>, vector<8x512xf32>
    tpu.vector_store %arg3[%c0_1, %c0_2], %0 {strides = array<i32>} : memref<8x512xf32, #tpu.memory_space<vmem>>, vector<8x512xf32>,
    return
  }
  func.func @transform_0(%arg0: i32) -> i32 {
    %c0_i32 = arith.constant 0 : i32
    %c0_i32_0 = arith.constant 0 : i32
    return %c0_i32 : i32
  }
  func.func @transform_1(%arg0: i32) -> (i32, i32) {
    %c0_i32 = arith.constant 0 : i32
    %c0_i32_0 = arith.constant 0 : i32
    return %arg0, %c0_i32 : i32, i32
  }
  func.func @transform_2(%arg0: i32) -> (i32, i32) {
    %c0_i32 = arith.constant 0 : i32
    %c0_i32_0 = arith.constant 0 : i32
    return %arg0, %c0_i32 : i32, i32
  }
}

</mosaic_0001>

<llo_original>
// kernel: denoiser_forward.1
$region0: #{denoiser_forward.1}
  #allocation0 [shape = 'u32[]', space=smem, size = 0x4, offset = 0x4, fixed_abs, tag = 'smem constant byte address 0x4 - core index']
  #allocation1 [shape = 'u32[144,128]{1,0:T(1,128)}', space=vmem, size = 0x12000, scoped, tag = 'internal scratch']
  #allocation2 [shape = 'f32[1]{0:T(128)S(6)}', space=smem, size = 0x200, scoped, tag = 'scoped memory for denoiser_forward.1']
  %s0 = inlined_call_operand.<no memory space> [shape: f32[1], index: 0, kind: input, shape index: {}]
  %s1 = inlined_call_operand.vmem [shape: f32[16,512], index: 1, kind: input, shape index: {}]
  %s2 = inlined_call_operand.vmem [shape: f32[16,512], index: 2, kind: output, shape index: {}]
  %s3 = sld [smem:[#allocation0]]
  $region41: #{denoiser_forward.1} parent=0
    _
  %s5 = ssub.s32 1, %s3
  %s6 = scalar_select 0, %s5, %s3
  %7 = sst [smem:[#allocation2]] %s0
  loop: start=0, step=1, limit=4
  $region2: #{denoiser_forward.1} parent=0 // loop_pre_header
    _
  $region3: #{denoiser_forward.1} parent=0 // loop_header
    %s9 = sphi 0, %s13
    %p10 = scmp.ge.s32.totalorder %s9, 4
    %s17 = sphi 0, %s17
    %s19 = sphi 0, %s17
    %s20 = sphi 0, %s19
    %s34 = sphi 0, %s20
    %s40 = sphi 0, %s42
    %s43 = sphi 0, %s40
    %s44 = sphi 0, %s43
    %s60 = sphi 0, %s44
    %s66 = sphi 0, %s68
    %s69 = sphi 0, %s66
    %s70 = sphi 0, %s69
    %s86 = sphi 0, %s70
  $region4: #{denoiser_forward.1} parent=0 // loop_header_branch
    %12 = sbr.rel (%p10) target = $region8
  $region5: #{denoiser_forward.1} parent=0 // loop_body
    %s14 = ssub.s32 %s9, 1
    %s15 = ssub.s32 %s9, 2
    %s16 = sadd.s32 %s9, 1
    %s18 = sadd.s32 %s17, 1
    %p21 = scmp.eq.s32.totalorder %s9, 1
    %p22 = scmp.ne.s32.totalorder %s17, %s19
    %p23 = scmp.eq.s32.totalorder %s9, 0
    %p24 = por %p22, %p23
    %p25 = scmp.ne.s32.totalorder %s17, %s19
    %p26 = scmp.eq.s32.totalorder %s14, 1
    %p27 = por %p25, %p26
    %p28 = scmp.ne.s32.totalorder %s19, %s20
    %p29 = scmp.eq.s32.totalorder %s14, 0
    %p30 = por %p28, %p29
    %p31 = scmp.ne.s32.totalorder %s19, %s20
    %p32 = scmp.eq.s32.totalorder %s15, 1
    %p33 = por %p31, %p32
    %p35 = scmp.ne.s32.totalorder %s20, %s34
    %p36 = scmp.eq.s32.totalorder %s15, 0
    %p37 = por %p35, %p36
    %s38 = ssub.s32 %s9, %s16
    %p39 = scmp.eq.s32.totalorder %s38, 0
    %s41 = sadd.s32 %s40, 1
    %s42 = scalar_select %p39, %s40, %s41
    %p45 = pneg %p39
    %p46 = scmp.eq.s32.totalorder %s9, 1
    %p47 = por %p45, %p46
    %p48 = scmp.ne.s32.totalorder %s40, %s43
    %p49 = scmp.eq.s32.totalorder %s9, 0
    %p50 = por %p48, %p49
    %p51 = scmp.ne.s32.totalorder %s40, %s43
    %p52 = scmp.eq.s32.totalorder %s14, 1
    %p53 = por %p51, %p52
    %p54 = scmp.ne.s32.totalorder %s43, %s44
    %p55 = scmp.eq.s32.totalorder %s14, 0
    %p56 = por %p54, %p55
    %p57 = scmp.ne.s32.totalorder %s43, %s44
    %p58 = scmp.eq.s32.totalorder %s15, 1
    %p59 = por %p57, %p58
    %p61 = scmp.ne.s32.totalorder %s44, %s60
    %p62 = scmp.eq.s32.totalorder %s15, 0
    %p63 = por %p61, %p62
    %s64 = ssub.s32 %s9, %s16
    %p65 = scmp.eq.s32.totalorder %s64, 0
    %s67 = sadd.s32 %s66, 1
    %s68 = scalar_select %p65, %s66, %s67
    %p71 = pneg %p65
    %p72 = scmp.eq.s32.totalorder %s9, 1
    %p73 = por %p71, %p72
    %p74 = scmp.ne.s32.totalorder %s66, %s69
    %p75 = scmp.eq.s32.totalorder %s9, 0
    %p76 = por %p74, %p75
    %p77 = scmp.ne.s32.totalorder %s66, %s69
    %p78 = scmp.eq.s32.totalorder %s14, 1
    %p79 = por %p77, %p78
    %p80 = scmp.ne.s32.totalorder %s69, %s70
    %p81 = scmp.eq.s32.totalorder %s14, 0
    %p82 = por %p80, %p81
    %p83 = scmp.ne.s32.totalorder %s69, %s70
    %p84 = scmp.eq.s32.totalorder %s15, 1
    %p85 = por %p83, %p84
    %p87 = scmp.ne.s32.totalorder %s70, %s86
    %p88 = scmp.eq.s32.totalorder %s15, 0
    %p89 = por %p87, %p88
    %p90 = scmp.le.s32.totalorder 1, %s9
    %p91 = scmp.lt.s32.totalorder %s9, 3
    %p92 = pnand %p90, %p91
    %p93 = pneg %p92
    // Predicated region
    $region9: #{denoiser_forward.1} parent=5 // pred_check
      _
    $region10: #{denoiser_forward.1} parent=5 // pred_check_branch
      %95 = sbr.rel (%p92) target = $region12
    $region11: #{denoiser_forward.1} parent=5 // pred_region
      %s96 = ssub.s32 %s9, 1
      // Predicated region
      $region13: #{denoiser_forward.1} parent=11 // pred_check
        %p97 = pneg %p30
      $region14: #{denoiser_forward.1} parent=11 // pred_check_branch
        %99 = sbr.rel (%p97) target = $region16
      $region15: #{denoiser_forward.1} parent=11 // pred_region
        _
      $region16: #{denoiser_forward.1} parent=11 // pred_fallthru
        _
    $region12: #{denoiser_forward.1} parent=5 // pred_fallthru
      _
    %p100 = scmp.lt.s32.totalorder %s9, 2
    // Predicated region
    $region17: #{denoiser_forward.1} parent=5 // pred_check
      %p101 = pneg %p100
    $region18: #{denoiser_forward.1} parent=5 // pred_check_branch
      %103 = sbr.rel (%p101) target = $region20
    $region19: #{denoiser_forward.1} parent=5 // pred_region
      // Predicated region
      $region21: #{denoiser_forward.1} parent=19 // pred_check
        %p104 = pneg %p50
      $region22: #{denoiser_forward.1} parent=19 // pred_check_branch
        %106 = sbr.rel (%p104) target = $region24
      $region23: #{denoiser_forward.1} parent=19 // pred_region
        %p107 = scmp.lt.s32.totalorder %s9, 1
        %s108 = scalar_select %p107, %s9, 1
        %s109 = smul.addr %s108, 4
        %s110 = smul.addr %s109, 8
        %s111 = scalar_lea.vmem %s1, %s110
      $region24: #{denoiser_forward.1} parent=19 // pred_fallthru
        _
    $region20: #{denoiser_forward.1} parent=5 // pred_fallthru
      _
    %p112 = scmp.le.s32.totalorder 1, %s9
    %p113 = scmp.lt.s32.totalorder %s9, 3
    %p114 = pnand %p112, %p113
    %p115 = pneg %p114
    // Predicated region
    $region25: #{denoiser_forward.1} parent=5 // pred_check
      _
    $region26: #{denoiser_forward.1} parent=5 // pred_check_branch
      %117 = sbr.rel (%p114) target = $region28
    $region27: #{denoiser_forward.1} parent=5 // pred_region
      %s118 = ssub.s32 %s9, 1
      %p119 = pneg %p30
      %p120 = pneg %p27
      %p121 = scmp.lt.s32.totalorder %s14, 1
      %s122 = scalar_select %p121, %s14, 1
      %s123 = smul.addr %s122, 4
      %s124 = smul.addr %s123, 8
      %s125 = scalar_lea.vmem %s1, %s124
      %p126 = pneg %p56
      %p127 = pneg %p53
      %p128 = pneg %p82
      %p129 = pneg %p79
      %p130 = scmp.lt.s32.totalorder %s14, 1
      %s131 = scalar_select %p130, %s14, 1
      %s132 = smul.addr %s131, 4
      %s133 = smul.addr %s132, 8
      %s134 = scalar_lea.vmem %s2, %s133
      %p135 = scmp.lt.s32.totalorder %s14, 1
      %s136 = scalar_select %p135, %s14, 1
      %s137 = smul.addr %s136, 4
      %s138 = smul.addr %s137, 8
      %s139 = scalar_lea.vmem %s1, %s138
      %p140 = scmp.lt.s32.totalorder %s14, 1
      %s141 = scalar_select %p140, %s14, 1
      %s142 = smul.addr %s141, 4
      %s143 = smul.addr %s142, 8
      %s144 = scalar_lea.vmem %s2, %s143
      %v145 = vld [vmem:[%s139] sm:$0xff]
      %v146 = vld [vmem:[%s139 + $0x8] sm:$0xff]
      %v147 = vld [vmem:[%s139 + $0x10] sm:$0xff]
      %v148 = vld [vmem:[%s139 + $0x18] sm:$0xff]
      %149 = vst [vmem:[%s144] sm:$0xff] %v145
      %150 = vst [vmem:[%s144 + $0x8] sm:$0xff] %v146
      %151 = vst [vmem:[%s144 + $0x10] sm:$0xff] %v147
      %152 = vst [vmem:[%s144 + $0x18] sm:$0xff] %v148
      %p153 = scmp.lt.s32.totalorder %s14, 1
      %s154 = scalar_select %p153, %s14, 1
      %s155 = smul.addr %s154, 4
      %s156 = smul.addr %s155, 8
      %s157 = scalar_lea.vmem %s2, %s156
      // Predicated region
      $region29: #{denoiser_forward.1} parent=27 // pred_check
        %p158 = pneg %p79
      $region30: #{denoiser_forward.1} parent=27 // pred_check_branch
        %160 = sbr.rel (%p158) target = $region32
      $region31: #{denoiser_forward.1} parent=27 // pred_region
        _
      $region32: #{denoiser_forward.1} parent=27 // pred_fallthru
        _
    $region28: #{denoiser_forward.1} parent=5 // pred_fallthru
      _
    %p161 = scmp.le.s32.totalorder 2, %s9
    // Predicated region
    $region33: #{denoiser_forward.1} parent=5 // pred_check
      %p162 = pneg %p161
    $region34: #{denoiser_forward.1} parent=5 // pred_check_branch
      %164 = sbr.rel (%p162) target = $region36
    $region35: #{denoiser_forward.1} parent=5 // pred_region
      %s165 = ssub.s32 %s9, 2
      // Predicated region
      $region37: #{denoiser_forward.1} parent=35 // pred_check
        %p166 = pneg %p85
      $region38: #{denoiser_forward.1} parent=35 // pred_check_branch
        %168 = sbr.rel (%p166) target = $region40
      $region39: #{denoiser_forward.1} parent=35 // pred_region
        %p169 = scmp.lt.s32.totalorder %s15, 1
        %s170 = scalar_select %p169, %s15, 1
        %s171 = smul.addr %s170, 4
        %s172 = smul.addr %s171, 8
        %s173 = scalar_lea.vmem %s2, %s172
      $region40: #{denoiser_forward.1} parent=35 // pred_fallthru
        _
    $region36: #{denoiser_forward.1} parent=5 // pred_fallthru
      _
  $region6: #{denoiser_forward.1} parent=0 // loop_footer
    %s13 = sadd.s32 1, %s9
  $region7: #{denoiser_forward.1} parent=0 // loop_footer_branch
    %8 = sbr.rel target = $region3
  $region8: #{denoiser_forward.1} parent=0 // loop_exit
    _

</llo_original>
